<compile_context>
chip_gen: v6e
topology: v6e:2x2x1
jax: 0.10.0
libtpu: 0.0.40
codegen_flags: <defaults>
</compile_context>

<pallas_src>
import jax
import jax.numpy as jnp
from jax.experimental import pallas as pl
from jax.experimental.pallas import tpu as pltpu

LANES = 1024            # lane-dense last dim: big multiple of 128 -> unmasked stores
MAX_BLOCK_ROWS = 2048   # 2048 x 1024 f32 = 8 MiB per tile


def _linear_kernel(x_ref, w_ref, b_ref, o_ref):
    # w_ref / b_ref live in SMEM; read the scalars once.
    # One fused VPU multiply-add per vreg, one unmasked 128-lane store per vreg.
    w = w_ref[0, 0]
    b = b_ref[0]
    o_ref[...] = x_ref[...] * w + b


def _pick_block_rows(rows):
    """Largest row tile that (a) leaves >= 2 grid steps when rows > 8 so both
    v7x TensorCores get work, (b) stays <= 8 MiB, (c) satisfies the (8, 128)
    tiling rule (multiple of 8, or the full dim when rows <= 8)."""
    if rows <= 8:
        return rows
    target = -(-rows // 2)                       # ceil(rows / 2) -> >= 2 tiles
    target = ((max(target, 8) + 7) // 8) * 8     # round up to a multiple of 8
    return min(MAX_BLOCK_ROWS, target)


def _linear_forward_impl(x, w, b):
    """x: (N, 1) f32, w: (1, 1) f32, b: (1,) f32 -> (N, 1) f32."""
    n, f = x.shape
    assert f == 1 and w.shape == (1, 1) and b.shape == (1,)
    dtype = x.dtype

    flat = x.reshape(-1)                 # free: (N, 1) -> (N,)

    # Lane-dense view. Aligned N: pure reshape, no copy / pad / slice.
    # Ragged N: minimal zero-pad to the next multiple of 1024 (only path with
    # an extra copy; padded lanes compute 0*w+b and are sliced off).
    padded = (n % LANES) != 0
    rows = pl.cdiv(n, LANES)
    if padded:
        flat = jnp.pad(flat, (0, rows * LANES - n))
    slab = flat.reshape(rows, LANES)

    block_rows = _pick_block_rows(rows)
    grid = (pl.cdiv(rows, block_rows),)  # last tile may be partial: OOB rows
                                         # compute garbage that is never written back

    out = pl.pallas_call(
        _linear_kernel,
        out_shape=jax.ShapeDtypeStruct((rows, LANES), dtype),
        grid=grid,
        in_specs=[
            pl.BlockSpec((block_rows, LANES), lambda i: (i, 0)),  # x tile in VMEM
            pl.BlockSpec(memory_space=pltpu.SMEM),                # W scalar
            pl.BlockSpec(memory_space=pltpu.SMEM),                # b scalar
        ],
        out_specs=pl.BlockSpec((block_rows, LANES), lambda i: (i, 0)),
        compiler_params=pltpu.CompilerParams(
            dimension_semantics=("parallel",),   # shard row tiles across TCs (v7x)
            vmem_limit_bytes=40 * 1024 * 1024,   # 2x(in+out) 8 MiB tiles = 32 MiB
        ),
        cost_estimate=pl.CostEstimate(
            flops=2 * n, transcendentals=0, bytes_accessed=8 * n),
    )(slab, w, b)

    y = out.reshape(-1)
    if padded:
        y = y[:n]
    return y.reshape(n, 1)


# jit the whole wrapper: one compiled program, no per-op Python dispatch.
linear_forward = jax.jit(_linear_forward_impl)


if __name__ == "__main__":
    key = jax.random.PRNGKey(0)
    kx, kw, kb = jax.random.split(key, 3)

    # Deterministic parameters (nn.Linear(1, 1): W (1, 1), b (1,)).
    w = jax.random.normal(kw, (1, 1), dtype=jnp.float32)
    b = jax.random.normal(kb, (1,), dtype=jnp.float32)

    # Small case matching the module's forward: (batch, 1) -> (batch, 1).
    batch = 8
    x = jax.random.normal(kx, (batch, 1), dtype=jnp.float32)
    y = linear_forward(x, w, b)
    jax.block_until_ready(y)
    assert y.shape == (batch, 1)
    assert jnp.allclose(y, x @ w.T + b, atol=1e-6), "mismatch vs reference (small)"

    # Large, 1024-aligned case: copy-free lane-dense path, 2 parallel row tiles.
    n_big = 1 << 20
    x_big = jax.random.normal(kx, (n_big, 1), dtype=jnp.float32)
    y_big = linear_forward(x_big, w, b)
    jax.block_until_ready(y_big)
    assert y_big.shape == (n_big, 1)
    assert jnp.allclose(y_big, x_big @ w.T + b, atol=1e-6), "mismatch vs reference (aligned)"

    # Ragged case: exercises the pad/slice fallback and a partial last row tile.
    n_rag = 600_000
    x_rag = jax.random.normal(kx, (n_rag, 1), dtype=jnp.float32)
    y_rag = linear_forward(x_rag, w, b)
    jax.block_until_ready(y_rag)
    assert y_rag.shape == (n_rag, 1)
    assert jnp.allclose(y_rag, x_rag @ w.T + b, atol=1e-6), "mismatch vs reference (ragged)"

    print("KERNEL_OK")
</pallas_src>

<mosaic_0001>
module attributes {stable_mosaic.version = 11 : i64} {
  func.func @_linear_kernel(%arg0: i32, %arg1: memref<1x1024xf32, #tpu.memory_space<vmem>>, %arg2: memref<1x1xf32, #tpu.memory_space<smem>>, %arg3: memref<1xf32, #tpu.memory_space<smem>>, %arg4: memref<1x1024xf32, #tpu.memory_space<vmem>>) attributes {dimension_semantics = [#tpu.dimension_semantics<parallel>], iteration_bounds = array<i64: 1>, scalar_prefetch = 0 : i64, scratch_operands = 0 : i64, tpu.core_type = #tpu.core_type<tc>, window_params = [{transform_indices = @transform_0, window_bounds = array<i64: 1, 1024>}, {transform_indices = @transform_1, window_bounds = array<i64: 1, 1>}, {transform_indices = @transform_2, window_bounds = array<i64: 1>}, {transform_indices = @transform_3, window_bounds = array<i64: 1, 1024>}]} {
    %c0 = arith.constant 0 : index
    %c0_0 = arith.constant 0 : index
    %0 = memref.load %arg2[%c0, %c0_0] : memref<1x1xf32, #tpu.memory_space<smem>>
    %c0_1 = arith.constant 0 : index
    %1 = memref.load %arg3[%c0_1] : memref<1xf32, #tpu.memory_space<smem>>
    %c0_2 = arith.constant 0 : index
    %c0_3 = arith.constant 0 : index
    %2 = vector.load %arg1[%c0_2, %c0_3] : memref<1x1024xf32, #tpu.memory_space<vmem>>, vector<1x1024xf32>
    %3 = vector.broadcast %0 : f32 to vector<1x1024xf32>
    %4 = arith.mulf %2, %3 : vector<1x1024xf32>
    %5 = vector.broadcast %1 : f32 to vector<1x1024xf32>
    %6 = arith.addf %4, %5 : vector<1x1024xf32>
    %c0_4 = arith.constant 0 : index
    %c0_5 = arith.constant 0 : index
    %7 = vector.load %arg4[%c0_4, %c0_5] : memref<1x1024xf32, #tpu.memory_space<vmem>>, vector<1x1024xf32>
    tpu.vector_store %arg4[%c0_4, %c0_5], %6 {strides = array<i32>} : memref<1x1024xf32, #tpu.memory_space<vmem>>, vector<1x1024xf32>,
    return
  }
  func.func @transform_0(%arg0: i32) -> (i32, i32) {
    %c0_i32 = arith.constant 0 : i32
    %c0_i32_0 = arith.constant 0 : i32
    return %arg0, %c0_i32 : i32, i32
  }
  func.func @transform_1(%arg0: i32) -> (i32, i32) {
    %c0_i32 = arith.constant 0 : i32
    %c0_i32_0 = arith.constant 0 : i32
    %c0_i32_1 = arith.constant 0 : i32
    return %c0_i32, %c0_i32_0 : i32, i32
  }
  func.func @transform_2(%arg0: i32) -> i32 {
    %c0_i32 = arith.constant 0 : i32
    %c0_i32_0 = arith.constant 0 : i32
    return %c0_i32 : i32
  }
  func.func @transform_3(%arg0: i32) -> (i32, i32) {
    %c0_i32 = arith.constant 0 : i32
    %c0_i32_0 = arith.constant 0 : i32
    return %arg0, %c0_i32 : i32, i32
  }
}

</mosaic_0001>

<llo_original>
// kernel: _linear_forward_impl.1
$region0: #{_linear_forward_impl.1}
  #allocation0 [shape = 'u32[]', space=smem, size = 0x4, offset = 0x4, fixed_abs, tag = 'smem constant byte address 0x4 - core index']
  #allocation1 [shape = 'u32[144,128]{1,0:T(1,128)}', space=vmem, size = 0x12000, scoped, tag = 'internal scratch']
  #allocation2 [shape = 'f32[1,1]{1,0:T(1,128)S(6)}', space=smem, size = 0x200, scoped, tag = 'scoped memory for _linear_forward_impl.1']
  #allocation3 [shape = 'f32[1]{0:T(128)S(6)}', space=smem, size = 0x200, scoped, tag = 'scoped memory for _linear_forward_impl.1']
  %s0 = inlined_call_operand.vmem [shape: f32[1,1024], index: 0, kind: input, shape index: {}]
  %s1 = inlined_call_operand.<no memory space> [shape: f32[1,1], index: 1, kind: input, shape index: {}]
  %s2 = inlined_call_operand.<no memory space> [shape: f32[1], index: 2, kind: input, shape index: {}]
  %s3 = inlined_call_operand.vmem [shape: f32[1,1024], index: 3, kind: output, shape index: {}]
  %s4 = sld [smem:[#allocation0]]
  $region22: #{_linear_forward_impl.1} parent=0
    _
  %s6 = ssub.s32 1, %s4
  %s7 = scalar_select 0, %s6, %s4
  %8 = sst [smem:[#allocation2]] %s1
  %9 = sst [smem:[#allocation3]] %s2
  // Predicated region
  $region2: #{_linear_forward_impl.1} parent=0 // pred_check
    _
  $region3: #{_linear_forward_impl.1} parent=0 // pred_check_branch
    %11 = sbr.rel (0) target = $region5
  $region4: #{_linear_forward_impl.1} parent=0 // pred_region
    _
  $region5: #{_linear_forward_impl.1} parent=0 // pred_fallthru
    _
  // Predicated region
  $region6: #{_linear_forward_impl.1} parent=0 // pred_check
    _
  $region7: #{_linear_forward_impl.1} parent=0 // pred_check_branch
    %13 = sbr.rel (0) target = $region9
  $region8: #{_linear_forward_impl.1} parent=0 // pred_region
    _
  $region9: #{_linear_forward_impl.1} parent=0 // pred_fallthru
    _
  // Predicated region
  $region10: #{_linear_forward_impl.1} parent=0 // pred_check
    _
  $region11: #{_linear_forward_impl.1} parent=0 // pred_check_branch
    %15 = sbr.rel (0) target = $region13
  $region12: #{_linear_forward_impl.1} parent=0 // pred_region
    _
  $region13: #{_linear_forward_impl.1} parent=0 // pred_fallthru
    _
  %s16 = sld [smem:[#allocation2]]
  %s17 = sld [smem:[#allocation3]]
  %v18 = vld [vmem:[%s0] sm:$0xff]
  %v19 = vstv %s16
  %v20 = vmul.f32 %v18, %v19
  %v21 = vstv %s17
  %v22 = vadd.f32 %v20, %v21
  %23 = vst [vmem:[%s3] sm:$0xff] %v22
  // Predicated region
  $region14: #{_linear_forward_impl.1} parent=0 // pred_check
    _
  $region15: #{_linear_forward_impl.1} parent=0 // pred_check_branch
    %25 = sbr.rel (0) target = $region17
  $region16: #{_linear_forward_impl.1} parent=0 // pred_region
    _
  $region17: #{_linear_forward_impl.1} parent=0 // pred_fallthru
    _
  // Predicated region
  $region18: #{_linear_forward_impl.1} parent=0 // pred_check
    _
  $region19: #{_linear_forward_impl.1} parent=0 // pred_check_branch
    %27 = sbr.rel (0) target = $region21
  $region20: #{_linear_forward_impl.1} parent=0 // pred_region
    _
  $region21: #{_linear_forward_impl.1} parent=0 // pred_fallthru
    _

</llo_original>
